<compile_context>
chip_gen: v6e
topology: v6e:2x2x1
jax: 0.10.0
libtpu: 0.0.40
codegen_flags: <defaults>
</compile_context>

<pallas_src>
import jax
import jax.numpy as jnp
from jax.experimental import pallas as pl
from jax.experimental.pallas import tpu as pltpu


def _choose_block_s(S, C, logit_bytes, block_s=None):
    """Pick the spatial tile width (lane axis)."""
    if block_s is not None:
        bs = max(128, (int(block_s) // 128) * 128)
        return S if bs >= S else bs

    TARGET_TILE_BYTES = 2 << 20        # ~2 MiB of logits per grid step
    MAX_WORKING_SET = 24 << 20         # double-buffered inputs cap (v7x-safe)

    per_col_bytes = C * logit_bytes + 4            # logits column + int32 target
    bs = (TARGET_TILE_BYTES // max(1, C * logit_bytes)) // 128 * 128
    cap = ((MAX_WORKING_SET // 2) // per_col_bytes) // 128 * 128
    bs = max(128, min(bs, max(128, cap)))
    # TODO(synk): for very large num_class (C*128*itemsize approaching VMEM),
    # the class axis would also need tiling (online softmax over C); not
    # implemented here.
    return S if bs >= S else bs


def _make_kernel(C, S, block_s, gamma, smooth, mode):
    """mode: 'mean' -> per-block partial sums; anything else -> per-position loss."""
    need_mask = (S % block_s) != 0
    gamma = float(gamma)

    def per_column_loss(x_ref, t_ref, a_ref, mask_tail):
        x = x_ref[...].astype(jnp.float32)           # (C, block_s)
        tgt = t_ref[...]                             # (1, block_s) int32
        alpha = a_ref[...].astype(jnp.float32)       # (C, 1)

        # softmax over the class (sublane) axis
        m = jnp.max(x, axis=0, keepdims=True)        # (1, bs)
        e = jnp.exp(x - m)                           # (C, bs)  EUP
        s = jnp.sum(e, axis=0, keepdims=True)        # (1, bs)

        # one-hot "gather" of the target class; reused for the alpha lookup
        one_hot = (jax.lax.broadcasted_iota(jnp.int32, x.shape, 0) == tgt
                   ).astype(jnp.float32)             # (C, bs)
        num = jnp.sum(e * one_hot, axis=0, keepdims=True)
        p = num / s + smooth                         # (1, bs)
        alpha_w = jnp.sum(alpha * one_hot, axis=0, keepdims=True)

        one_minus = 1.0 - p
        if gamma == 2.0:
            focal = one_minus * one_minus
        elif gamma == 1.0:
            focal = one_minus
        elif gamma == 0.0:
            focal = jnp.ones_like(one_minus)
        else:
            focal = jnp.power(one_minus, gamma)      # matches torch.pow semantics

        loss = -alpha_w * focal * jnp.log(p)         # (1, bs)

        if mask_tail:
            # Only the last spatial tile has out-of-range columns; the mask is
            # a single (1, block_s) compare/select (trivially all-true on
            # earlier tiles) and also squashes any NaNs from padded columns.
            s_idx = pl.program_id(1)
            col = (jax.lax.broadcasted_iota(jnp.int32, loss.shape, 1)
                   + s_idx * block_s)
            loss = jnp.where(col < S, loss, 0.0)
        return loss

    if mode == 'mean':
        def kernel(x_ref, t_ref, a_ref, out_ref):
            loss = per_column_loss(x_ref, t_ref, a_ref, need_mask)
            psum = jnp.sum(loss, axis=1, keepdims=True)          # (1, 1)
            # Broadcast the partial across a 128-lane slice (keeps the output
            # BlockSpec (8,128)-compliant); lane 0 is read back outside.
            out_ref[...] = jnp.broadcast_to(psum.reshape(1, 1, 1), out_ref.shape)
    else:
        def kernel(x_ref, t_ref, a_ref, out_ref):
            loss = per_column_loss(x_ref, t_ref, a_ref, False)
            out_ref[...] = loss.reshape(out_ref.shape)

    return kernel


def multi_focal_loss(logit, target, *, num_class=None, alpha=None, gamma=2,
                     reduction='mean', smooth=1e-4, block_s=None):
    """Pallas implementation of MultiFocalLoss.forward."""
    shape = logit.shape
    N, C = shape[0], shape[1]
    if num_class is None:
        num_class = C

    # alpha handling mirrors the torch __init__
    if alpha is None:
        alpha_arr = jnp.full((num_class,), 0.5, dtype=jnp.float32)
    elif isinstance(alpha, (int, float)):
        alpha_arr = jnp.full((num_class,), float(alpha), dtype=jnp.float32)
    else:
        alpha_arr = jnp.asarray(alpha, dtype=jnp.float32).reshape(-1)
    if alpha_arr.shape[0] != num_class:
        raise RuntimeError('the length not equal to number of class')

    S = 1
    for d in shape[2:]:
        S *= int(d)
    ori_shape = target.shape

    # Native-layout views (contiguous reshapes only — no HBM transpose).
    x3 = logit.reshape(N, C, S)                         # (N, C, S)
    t3 = target.reshape(N, 1, S).astype(jnp.int32)      # (N, 1, S)
    a = alpha_arr.reshape(C, 1)                         # (C, 1)

    logit_bytes = jnp.dtype(logit.dtype).itemsize
    bs = _choose_block_s(S, C, logit_bytes, block_s)
    nb = (S + bs - 1) // bs

    mode = 'mean' if reduction == 'mean' else 'per_elem'
    kernel = _make_kernel(C, S, bs, gamma, float(smooth), mode)

    in_specs = [
        pl.BlockSpec((None, C, bs), lambda n, s: (n, 0, s)),   # logits (native)
        pl.BlockSpec((None, 1, bs), lambda n, s: (n, 0, s)),   # targets
        pl.BlockSpec((C, 1), lambda n, s: (0, 0)),             # alpha (same block)
    ]
    cparams = pltpu.CompilerParams(
        dimension_semantics=("parallel", "parallel"),
        vmem_limit_bytes=48 * 1024 * 1024,
    )

    if reduction == 'mean':
        partials = pl.pallas_call(
            kernel,
            grid=(N, nb),
            in_specs=in_specs,
            out_specs=pl.BlockSpec((1, 1, 128), lambda n, s: (n, 0, s)),
            out_shape=jax.ShapeDtypeStruct((N, 1, nb * 128), jnp.float32),
            compiler_params=cparams,
        )(x3, t3, a)
        total = jnp.sum(partials.reshape(N, nb, 128)[:, :, 0])
        return total / float(N * S)

    out = pl.pallas_call(
        kernel,
        grid=(N, nb),
        in_specs=in_specs,
        out_specs=pl.BlockSpec((1, 1, bs), lambda n, s: (n, 0, s)),
        out_shape=jax.ShapeDtypeStruct((N, 1, S), jnp.float32),
        compiler_params=cparams,
    )(x3, t3, a)
    flat = out.reshape(N * S)
    if reduction == 'none':
        return flat.reshape(ori_shape)
    # Any other reduction string: the reference returns the unreduced flat loss.
    return flat


class MultiFocalLoss:
    """Thin class wrapper mirroring the PyTorch module's interface."""

    def __init__(self, num_class, alpha=None, gamma=2, reduction='mean'):
        self.num_class = num_class
        self.alpha = alpha
        self.gamma = gamma
        self.reduction = reduction
        self.smooth = 0.0001

    def __call__(self, logit, target):
        return multi_focal_loss(logit, target, num_class=self.num_class,
                                alpha=self.alpha, gamma=self.gamma,
                                reduction=self.reduction, smooth=self.smooth)


def _reference_loss(logit, target, alpha, gamma, smooth=1e-4, reduction='mean'):
    """Pure-JAX port of the PyTorch module, for correctness checking."""
    prob = jax.nn.softmax(logit.astype(jnp.float32), axis=1)
    N, C = logit.shape[0], logit.shape[1]
    prob = prob.reshape(N, C, -1).transpose(0, 2, 1).reshape(-1, C)
    t = target.reshape(-1)
    p = prob[jnp.arange(t.shape[0]), t] + smooth
    logpt = jnp.log(p)
    alpha_w = alpha[t]
    loss = -alpha_w * (1.0 - p) ** gamma * logpt
    if reduction == 'mean':
        return loss.mean()
    if reduction == 'none':
        return loss.reshape(target.shape)
    return loss


if __name__ == "__main__":
    key = jax.random.PRNGKey(0)
    N, C, H, W = 2, 4, 16, 16
    k1, k2 = jax.random.split(key)
    logit = jax.random.normal(k1, (N, C, H, W), dtype=jnp.float32)
    target = jax.random.randint(k2, (N, H, W), 0, C, dtype=jnp.int32)

    alpha_ref = jnp.full((C,), 0.5, dtype=jnp.float32)

    # mean reduction (default)
    loss = MultiFocalLoss(num_class=C, alpha=None, gamma=2, reduction='mean')(
        logit, target)
    loss = jax.block_until_ready(loss)
    ref = _reference_loss(logit, target, alpha_ref, 2.0, reduction='mean')
    if not bool(jnp.allclose(loss, ref, rtol=1e-4, atol=1e-6)):
        raise AssertionError(f"mean mismatch: pallas={loss} ref={ref}")

    # 'none' reduction (per-element loss, reshaped to target's shape)
    loss_none = multi_focal_loss(logit, target, num_class=C, alpha=None,
                                 gamma=2, reduction='none')
    loss_none = jax.block_until_ready(loss_none)
    ref_none = _reference_loss(logit, target, alpha_ref, 2.0, reduction='none')
    if not bool(jnp.allclose(loss_none, ref_none, rtol=1e-4, atol=1e-6)):
        raise AssertionError("none-reduction mismatch")

    # non-multiple-of-128 spatial tail (exercises the tail mask path)
    k3, k4 = jax.random.split(k2)
    logit2 = jax.random.normal(k3, (2, C, 10, 15), dtype=jnp.float32)
    target2 = jax.random.randint(k4, (2, 10, 15), 0, C, dtype=jnp.int32)
    loss2 = multi_focal_loss(logit2, target2, num_class=C, alpha=0.25,
                             gamma=2, reduction='mean', block_s=128)
    loss2 = jax.block_until_ready(loss2)
    ref2 = _reference_loss(logit2, target2, jnp.full((C,), 0.25, jnp.float32),
                           2.0, reduction='mean')
    if not bool(jnp.allclose(loss2, ref2, rtol=1e-4, atol=1e-6)):
        raise AssertionError(f"tail-mask mean mismatch: pallas={loss2} ref={ref2}")

    print("KERNEL_OK")
</pallas_src>

<mosaic_0001>
module attributes {stable_mosaic.version = 11 : i64} {
  func.func @kernel(%arg0: i32, %arg1: i32, %arg2: memref<1x4x256xf32, #tpu.memory_space<vmem>>, %arg3: memref<1x1x256xi32, #tpu.memory_space<vmem>>, %arg4: memref<4x1xf32, #tpu.memory_space<vmem>>, %arg5: memref<1x1x128xf32, #tpu.memory_space<vmem>>) attributes {dimension_semantics = [#tpu.dimension_semantics<parallel>, #tpu.dimension_semantics<parallel>], iteration_bounds = array<i64: 2, 1>, scalar_prefetch = 0 : i64, scratch_operands = 0 : i64, tpu.core_type = #tpu.core_type<tc>, window_params = [{transform_indices = @transform_0, window_bounds = array<i64: 1, 4, 256>}, {transform_indices = @transform_1, window_bounds = array<i64: 1, 1, 256>}, {pipeline_mode = #tpu.pipeline_mode<synchronous>, transform_indices = @transform_2, window_bounds = array<i64: 4, 1>}, {transform_indices = @transform_3, window_bounds = array<i64: 1, 1, 128>}]} {
    %c0 = arith.constant 0 : index
    %c0_0 = arith.constant 0 : index
    %c0_1 = arith.constant 0 : index
    %0 = vector.load %arg2[%c0, %c0_0, %c0_1] : memref<1x4x256xf32, #tpu.memory_space<vmem>>, vector<1x4x256xf32>
    %1 = vector.shape_cast %0 : vector<1x4x256xf32> to vector<4x256xf32>
    %c0_2 = arith.constant 0 : index
    %c0_3 = arith.constant 0 : index
    %c0_4 = arith.constant 0 : index
    %2 = vector.load %arg3[%c0_2, %c0_3, %c0_4] : memref<1x1x256xi32, #tpu.memory_space<vmem>>, vector<1x1x256xi32>
    %3 = vector.shape_cast %2 : vector<1x1x256xi32> to vector<1x256xi32>
    %c0_5 = arith.constant 0 : index
    %c0_6 = arith.constant 0 : index
    %4 = vector.load %arg4[%c0_5, %c0_6] : memref<4x1xf32, #tpu.memory_space<vmem>>, vector<4x1xf32>
    %cst = arith.constant dense<0xFF800000> : vector<256xf32>
    %5 = vector.multi_reduction <maximumf>, %1, %cst [0] : vector<4x256xf32> to vector<256xf32>
    %6 = vector.shape_cast %5 : vector<256xf32> to vector<1x256xf32>
    %7 = vector.broadcast %6 : vector<1x256xf32> to vector<4x256xf32>
    %8 = arith.subf %1, %7 : vector<4x256xf32>
    %9 = math.exp %8 : vector<4x256xf32>
    %cst_7 = arith.constant dense<0.000000e+00> : vector<256xf32>
    %10 = vector.multi_reduction <add>, %9, %cst_7 [0] : vector<4x256xf32> to vector<256xf32>
    %11 = vector.shape_cast %10 : vector<256xf32> to vector<1x256xf32>
    %12 = tpu.iota {dimensions = array<i32: 0>} : vector<4x256xi32>
    %13 = vector.broadcast %3 : vector<1x256xi32> to vector<4x256xi32>
    %14 = arith.cmpi eq, %12, %13 : vector<4x256xi32>
    %15 = arith.extui %14 : vector<4x256xi1> to vector<4x256xi32>
    %16 = arith.sitofp %15 : vector<4x256xi32> to vector<4x256xf32>
    %17 = arith.mulf %9, %16 : vector<4x256xf32>
    %cst_8 = arith.constant dense<0.000000e+00> : vector<256xf32>
    %18 = vector.multi_reduction <add>, %17, %cst_8 [0] : vector<4x256xf32> to vector<256xf32>
    %19 = vector.shape_cast %18 : vector<256xf32> to vector<1x256xf32>
    %20 = arith.divf %19, %11 : vector<1x256xf32>
    %cst_9 = arith.constant 9.99999974E-5 : f32
    %21 = vector.broadcast %cst_9 : f32 to vector<1x256xf32>
    %22 = arith.addf %20, %21 : vector<1x256xf32>
    %23 = vector.broadcast %4 : vector<4x1xf32> to vector<4x256xf32>
    %24 = arith.mulf %23, %16 : vector<4x256xf32>
    %cst_10 = arith.constant dense<0.000000e+00> : vector<256xf32>
    %25 = vector.multi_reduction <add>, %24, %cst_10 [0] : vector<4x256xf32> to vector<256xf32>
    %26 = vector.shape_cast %25 : vector<256xf32> to vector<1x256xf32>
    %cst_11 = arith.constant 1.000000e+00 : f32
    %27 = vector.broadcast %cst_11 : f32 to vector<1x256xf32>
    %28 = arith.subf %27, %22 : vector<1x256xf32>
    %29 = arith.mulf %28, %28 : vector<1x256xf32>
    %cst_12 = arith.constant 0.000000e+00 : f32
    %30 = vector.broadcast %cst_12 : f32 to vector<1x256xf32>
    %31 = arith.subf %30, %26 : vector<1x256xf32>
    %32 = arith.mulf %31, %29 : vector<1x256xf32>
    %33 = math.log %22 : vector<1x256xf32>
    %34 = arith.mulf %32, %33 : vector<1x256xf32>
    %cst_13 = arith.constant dense<0.000000e+00> : vector<1xf32>
    %35 = vector.multi_reduction <add>, %34, %cst_13 [1] : vector<1x256xf32> to vector<1xf32>
    %36 = vector.shape_cast %35 : vector<1xf32> to vector<1x1xf32>
    %37 = vector.shape_cast %36 : vector<1x1xf32> to vector<1x1x1xf32>
    %38 = vector.shape_cast %37 : vector<1x1x1xf32> to vector<1x1x1xf32>
    %39 = vector.broadcast %38 : vector<1x1x1xf32> to vector<1x1x128xf32>
    %c0_14 = arith.constant 0 : index
    %c0_15 = arith.constant 0 : index
    %c0_16 = arith.constant 0 : index
    %40 = vector.load %arg5[%c0_14, %c0_15, %c0_16] : memref<1x1x128xf32, #tpu.memory_space<vmem>>, vector<1x1x128xf32>
    tpu.vector_store %arg5[%c0_14, %c0_15, %c0_16], %39 {strides = array<i32>} : memref<1x1x128xf32, #tpu.memory_space<vmem>>, vector<1x1x128xf32>,
    return
  }
  func.func @transform_0(%arg0: i32, %arg1: i32) -> (i32, i32, i32) {
    %c0_i32 = arith.constant 0 : i32
    %c0_i32_0 = arith.constant 0 : i32
    return %arg0, %c0_i32, %arg1 : i32, i32, i32
  }
  func.func @transform_1(%arg0: i32, %arg1: i32) -> (i32, i32, i32) {
    %c0_i32 = arith.constant 0 : i32
    %c0_i32_0 = arith.constant 0 : i32
    return %arg0, %c0_i32, %arg1 : i32, i32, i32
  }
  func.func @transform_2(%arg0: i32, %arg1: i32) -> (i32, i32) {
    %c0_i32 = arith.constant 0 : i32
    %c0_i32_0 = arith.constant 0 : i32
    %c0_i32_1 = arith.constant 0 : i32
    return %c0_i32, %c0_i32_0 : i32, i32
  }
  func.func @transform_3(%arg0: i32, %arg1: i32) -> (i32, i32, i32) {
    %c0_i32 = arith.constant 0 : i32
    %c0_i32_0 = arith.constant 0 : i32
    return %arg0, %c0_i32, %arg1 : i32, i32, i32
  }
}

</mosaic_0001>

<llo_original>
// kernel: tpu_custom_call.1
$region0: #{tpu_custom_call.1}
  #allocation0 [shape = 'u32[]', space=smem, size = 0x4, offset = 0x4, fixed_abs, tag = 'smem constant byte address 0x4 - core index']
  #allocation1 [shape = 'u32[144,128]{1,0:T(1,128)}', space=vmem, size = 0x12000, scoped, tag = 'internal scratch']
  %s0 = inlined_call_operand.hbm [shape: f32[2,4,256], index: 0, kind: input, shape index: {}]
  %s1 = inlined_call_operand.vmem [shape: s32[2,1,256], index: 1, kind: input, shape index: {}]
  %s2 = inlined_call_operand.vmem [shape: f32[4,1], index: 2, kind: input, shape index: {}]
  %s3 = inlined_call_operand.hbm [shape: f32[2,1,128], index: 3, kind: output, shape index: {}]
  %s4 = sld [smem:[#allocation0]]
  $region49: #{tpu_custom_call.1} parent=0
    _
  %s6 = ssub.s32 1, %s4
  %s7 = scalar_select 0, %s6, %s4
  $region1: #{tpu_custom_call.1} parent=0
    #allocation2 [shape = 'u8[8192]{0}', space=vmem, size = 0x2000, scoped, tag = 'input window, operand 0']
    #allocation3 [shape = 's32[2]{0}', space=sflag, size = 0x8, scoped, tag = 'scoped memory for tpu_custom_call.1']
    #allocation4 [shape = 's32[2]{0}', space=sflag, size = 0x8, scoped, tag = 'scoped memory for tpu_custom_call.1']
    #allocation5 [shape = 'u8[1024]{0}', space=vmem, size = 0x400, scoped, tag = 'output window, operand 0']
    %8 = vsyncpa [#allocation3], 0
    %s9 = scalar_lea.sflag [#allocation3], 1
    %10 = vsyncpa %s9, 0
    %11 = vsyncpa [#allocation4], 0
    %s12 = scalar_lea.sflag [#allocation4], 1
    %13 = vsyncpa %s12, 0
    loop: start=0, step=1, limit=4
    $region2: #{tpu_custom_call.1} parent=1 // loop_pre_header
      _
    $region3: #{tpu_custom_call.1} parent=1 // loop_header
      %s15 = sphi 0, %s19
      %p16 = scmp.ge.s32.totalorder %s15, 4
      %s22 = sphi 0, %s34
      %s23 = sphi 0, %s30
      %s24 = sphi 0, %s22
      %s25 = sphi 0, %s23
      %s26 = sphi 0, %s24
      %s27 = sphi 0, %s25
      %s39 = sphi 0, %s41
      %s42 = sphi 0, %s39
      %s43 = sphi 0, %s42
      %s59 = sphi 0, %s43
      %s67 = sphi 0, %s69
      %s70 = sphi 0, %s67
      %s71 = sphi 0, %s70
      %s87 = sphi 0, %s71
      %s91 = sphi 0, %s91
      %s93 = sphi 0, %s91
      %s94 = sphi 0, %s93
      %s108 = sphi 0, %s94
      %s116 = sphi 0, %s118
      %s119 = sphi 0, %s116
      %s120 = sphi 0, %s119
      %s136 = sphi 0, %s120
    $region4: #{tpu_custom_call.1} parent=1 // loop_header_branch
      %18 = sbr.rel (%p16) target = $region8
    $region5: #{tpu_custom_call.1} parent=1 // loop_body
      %s20 = ssub.s32 %s15, 1
      %s21 = ssub.s32 %s15, 2
      %s28 = sadd.s32 1, %s23
      %p29 = scmp.ge.s32.totalorder %s28, 1
      %s30 = scalar_select %p29, 0, %s28
      %s31 = sadd.s32 1, %s22
      %s32 = scalar_select %p29, %s31, %s22
      %p33 = scmp.ge.s32.totalorder %s32, 2
      %s34 = scalar_select %p33, 0, %s32
      %s35 = ssub.s32 %s22, %s34
      %s36 = ssub.s32 %s23, %s30
      %s37 = sor.u32 %s35, %s36
      %p38 = scmp.eq.s32.totalorder %s37, 0
      %s40 = sadd.s32 %s39, 1
      %s41 = scalar_select %p38, %s39, %s40
      %p44 = pneg %p38
      %p45 = scmp.eq.s32.totalorder %s15, 1
      %p46 = por %p44, %p45
      %p47 = scmp.ne.s32.totalorder %s39, %s42
      %p48 = scmp.eq.s32.totalorder %s15, 0
      %p49 = por %p47, %p48
      %p50 = scmp.ne.s32.totalorder %s39, %s42
      %p51 = scmp.eq.s32.totalorder %s20, 1
      %p52 = por %p50, %p51
      %p53 = scmp.ne.s32.totalorder %s42, %s43
      %p54 = scmp.eq.s32.totalorder %s20, 0
      %p55 = por %p53, %p54
      %p56 = scmp.ne.s32.totalorder %s42, %s43
      %p57 = scmp.eq.s32.totalorder %s21, 1
      %p58 = por %p56, %p57
      %p60 = scmp.ne.s32.totalorder %s43, %s59
      %p61 = scmp.eq.s32.totalorder %s21, 0
      %p62 = por %p60, %p61
      %s63 = ssub.s32 %s22, %s34
      %s64 = ssub.s32 %s23, %s30
      %s65 = sor.u32 %s63, %s64
      %p66 = scmp.eq.s32.totalorder %s65, 0
      %s68 = sadd.s32 %s67, 1
      %s69 = scalar_select %p66, %s67, %s68
      %p72 = pneg %p66
      %p73 = scmp.eq.s32.totalorder %s15, 1
      %p74 = por %p72, %p73
      %p75 = scmp.ne.s32.totalorder %s67, %s70
      %p76 = scmp.eq.s32.totalorder %s15, 0
      %p77 = por %p75, %p76
      %p78 = scmp.ne.s32.totalorder %s67, %s70
      %p79 = scmp.eq.s32.totalorder %s20, 1
      %p80 = por %p78, %p79
      %p81 = scmp.ne.s32.totalorder %s70, %s71
      %p82 = scmp.eq.s32.totalorder %s20, 0
      %p83 = por %p81, %p82
      %p84 = scmp.ne.s32.totalorder %s70, %s71
      %p85 = scmp.eq.s32.totalorder %s21, 1
      %p86 = por %p84, %p85
      %p88 = scmp.ne.s32.totalorder %s71, %s87
      %p89 = scmp.eq.s32.totalorder %s21, 0
      %p90 = por %p88, %p89
      %s92 = sadd.s32 %s91, 1
      %p95 = scmp.eq.s32.totalorder %s15, 1
      %p96 = scmp.ne.s32.totalorder %s91, %s93
      %p97 = scmp.eq.s32.totalorder %s15, 0
      %p98 = por %p96, %p97
      %p99 = scmp.ne.s32.totalorder %s91, %s93
      %p100 = scmp.eq.s32.totalorder %s20, 1
      %p101 = por %p99, %p100
      %p102 = scmp.ne.s32.totalorder %s93, %s94
      %p103 = scmp.eq.s32.totalorder %s20, 0
      %p104 = por %p102, %p103
      %p105 = scmp.ne.s32.totalorder %s93, %s94
      %p106 = scmp.eq.s32.totalorder %s21, 1
      %p107 = por %p105, %p106
      %p109 = scmp.ne.s32.totalorder %s94, %s108
      %p110 = scmp.eq.s32.totalorder %s21, 0
      %p111 = por %p109, %p110
      %s112 = ssub.s32 %s22, %s34
      %s113 = ssub.s32 %s23, %s30
      %s114 = sor.u32 %s112, %s113
      %p115 = scmp.eq.s32.totalorder %s114, 0
      %s117 = sadd.s32 %s116, 1
      %s118 = scalar_select %p115, %s116, %s117
      %p121 = pneg %p115
      %p122 = scmp.eq.s32.totalorder %s15, 1
      %p123 = por %p121, %p122
      %p124 = scmp.ne.s32.totalorder %s116, %s119
      %p125 = scmp.eq.s32.totalorder %s15, 0
      %p126 = por %p124, %p125
      %p127 = scmp.ne.s32.totalorder %s116, %s119
      %p128 = scmp.eq.s32.totalorder %s20, 1
      %p129 = por %p127, %p128
      %p130 = scmp.ne.s32.totalorder %s119, %s120
      %p131 = scmp.eq.s32.totalorder %s20, 0
      %p132 = por %p130, %p131
      %p133 = scmp.ne.s32.totalorder %s119, %s120
      %p134 = scmp.eq.s32.totalorder %s21, 1
      %p135 = por %p133, %p134
      %p137 = scmp.ne.s32.totalorder %s120, %s136
      %p138 = scmp.eq.s32.totalorder %s21, 0
      %p139 = por %p137, %p138
      %p140 = scmp.le.s32.totalorder 1, %s15
      %p141 = scmp.lt.s32.totalorder %s15, 3
      %p142 = pnand %p140, %p141
      %p143 = pneg %p142
      // Predicated region
      $region9: #{tpu_custom_call.1} parent=5 // pred_check
        _
      $region10: #{tpu_custom_call.1} parent=5 // pred_check_branch
        %145 = sbr.rel (%p142) target = $region12
      $region11: #{tpu_custom_call.1} parent=5 // pred_region
        %s146 = ssub.s32 %s15, 1
        // Predicated region
        $region13: #{tpu_custom_call.1} parent=11 // pred_check
          %p147 = pneg %p104
        $region14: #{tpu_custom_call.1} parent=11 // pred_check_branch
          %149 = sbr.rel (%p147) target = $region16
        $region15: #{tpu_custom_call.1} parent=11 // pred_region
          _
        $region16: #{tpu_custom_call.1} parent=11 // pred_fallthru
          _
      $region12: #{tpu_custom_call.1} parent=5 // pred_fallthru
        _
      %p150 = scmp.lt.s32.totalorder %s15, 2
      // Predicated region
      $region17: #{tpu_custom_call.1} parent=5 // pred_check
        %p151 = pneg %p150
      $region18: #{tpu_custom_call.1} parent=5 // pred_check_branch
        %153 = sbr.rel (%p151) target = $region20
      $region19: #{tpu_custom_call.1} parent=5 // pred_region
        // Predicated region
        $region21: #{tpu_custom_call.1} parent=19 // pred_check
          %p154 = pneg %p49
        $region22: #{tpu_custom_call.1} parent=19 // pred_check_branch
          %156 = sbr.rel (%p154) target = $region24
        $region23: #{tpu_custom_call.1} parent=19 // pred_region
          %s157 = sand.u32 %s39, 1
          %s158 = scalar_lea.sflag [#allocation3], %s157
          %s159 = sand.u32 %s39, 1
          %s160 = smul.addr %s159, 8
          %s161 = scalar_lea.vmem [#allocation2], %s160
          %s162 = smul.u32 2, %s23
          %s164 = ssub.s32 128, 128
          %165 = vsyncadd %s158, %s164
          %s166 = smul.addr %s22, 2
          %s167 = sadd.s32 %s162, %s166
          %s168 = smul.addr %s167, 64
          %s169 = scalar_lea.hbm %s0, %s168
          %s171 = sshll.u32 %s161, 4
          %s172 = int_to_ptr.vmem [resolvable:$true] %s171
          %174 = dma.hbm_to_vmem [thread:$0]  %s169, 128, %s172, %s158
        $region24: #{tpu_custom_call.1} parent=19 // pred_fallthru
          _
        // Predicated region
        $region25: #{tpu_custom_call.1} parent=19 // pred_check
          %p175 = pneg %p77
        $region26: #{tpu_custom_call.1} parent=19 // pred_check_branch
          %177 = sbr.rel (%p175) target = $region28
        $region27: #{tpu_custom_call.1} parent=19 // pred_region
          %s178 = smul.u32 2, %s23
          %p179 = scmp.lt.s32.totalorder %s22, 1
          %s180 = scalar_select %p179, %s22, 1
          %p181 = scmp.lt.s32.totalorder %s178, 1
          %s182 = scalar_select %p181, %s178, 1
          %s183 = smul.addr %s180, 2
          %s184 = sadd.s32 %s182, %s183
          %s185 = scalar_lea.vmem %s1, %s184
          %s186 = smul.u32 2, %s23
        $region28: #{tpu_custom_call.1} parent=19 // pred_fallthru
          _
      $region20: #{tpu_custom_call.1} parent=5 // pred_fallthru
        _
      %p187 = scmp.le.s32.totalorder 1, %s15
      %p188 = scmp.lt.s32.totalorder %s15, 3
      %p189 = pnand %p187, %p188
      %p190 = pneg %p189
      // Predicated region
      $region29: #{tpu_custom_call.1} parent=5 // pred_check
        _
      $region30: #{tpu_custom_call.1} parent=5 // pred_check_branch
        %192 = sbr.rel (%p189) target = $region32
      $region31: #{tpu_custom_call.1} parent=5 // pred_region
        %s193 = ssub.s32 %s15, 1
        %s194 = sand.u32 %s42, 1
        %s195 = scalar_lea.sflag [#allocation3], %s194
        %s196 = sand.u32 %s42, 1
        %s197 = smul.addr %s196, 8
        %s198 = scalar_lea.vmem [#allocation2], %s197
        // Predicated region
        $region33: #{tpu_custom_call.1} parent=31 // pred_check
          %p199 = pneg %p55
        $region34: #{tpu_custom_call.1} parent=31 // pred_check_branch
          %201 = sbr.rel (%p199) target = $region36
        $region35: #{tpu_custom_call.1} parent=31 // pred_region
          %202 = dma.done %s195, 128
        $region36: #{tpu_custom_call.1} parent=31 // pred_fallthru
          _
        %s203 = sand.u32 %s42, 1
        %s204 = scalar_lea.sflag [#allocation3], %s203
        %s205 = sand.u32 %s42, 1
        %s206 = smul.addr %s205, 8
        %s207 = scalar_lea.vmem [#allocation2], %s206
        %p208 = pneg %p55
        %p209 = pneg %p52
        %s210 = smul.u32 2, %s25
        %p211 = scmp.lt.s32.totalorder %s24, 1
        %s212 = scalar_select %p211, %s24, 1
        %p213 = scmp.lt.s32.totalorder %s210, 1
        %s214 = scalar_select %p213, %s210, 1
        %s215 = smul.addr %s212, 2
        %s216 = sadd.s32 %s214, %s215
        %s217 = scalar_lea.vmem %s1, %s216
        %p218 = pneg %p83
        %p219 = pneg %p80
        %p220 = pneg %p104
        %p221 = pneg %p101
        %p222 = pneg %p132
        %p223 = pneg %p129
        %s224 = sand.u32 %s119, 1
        %s225 = scalar_lea.sflag [#allocation4], %s224
        %s226 = sand.u32 %s119, 1
        %s227 = scalar_lea.vmem [#allocation5], %s226
        %s228 = smul.u32 2, %s25
        %s229 = smul.u32 2, %s25
        %p230 = scmp.lt.s32.totalorder %s24, 1
        %s231 = scalar_select %p230, %s24, 1
        %p232 = scmp.lt.s32.totalorder %s229, 1
        %s233 = scalar_select %p232, %s229, 1
        %s234 = smul.addr %s231, 2
        %s235 = sadd.s32 %s233, %s234
        %s236 = scalar_lea.vmem %s1, %s235
        %s237 = smul.u32 2, %s25
        %v238 = vld [vmem:[%s198] sm:$0xff]
        %v239 = vld [vmem:[%s236] sm:$0x3]
        %v240 = vld [vmem:[%s2] sm:$0xf]
        %v242 = vcombine.high %v238, %v238
        %vm244 = vcmask 1043456
        %v245 = vsel %vm244, %v238, -inf
        %v246 = vrot.slane %v245, 4
        %v247 = vmax.f32 %v245, %v246
        %v248 = vrot.slane %v247, 2
        %v249 = vmax.f32 %v247, %v248
        %v250 = vrot.slane %v249, 1
        %v251 = vmax.f32 %v249, %v250
        %v252 = vsel %vm244, %v242, -inf
        %v253 = vrot.slane %v252, 4
        %v254 = vmax.f32 %v252, %v253
        %v255 = vrot.slane %v254, 2
        %v256 = vmax.f32 %v254, %v255
        %v257 = vrot.slane %v256, 1
        %v258 = vmax.f32 %v256, %v257
        %v261 = vcombine.low %v251, %v258
        %v263 = vsub.f32 %v238, %v261
        %v264 = vmul.f32 %v263, 1.442695
        %v265 = vpow.pop %v264
        %v267 = vcombine.high %v265, %v265
        %v269 = vsel %vm244, %v265, 0.0
        %v270 = vrot.slane %v269, 4
        %v271 = vadd.f32 %v269, %v270
        %v272 = vrot.slane %v271, 2
        %v273 = vadd.f32 %v271, %v272
        %v274 = vrot.slane %v273, 1
        %v275 = vadd.f32 %v273, %v274
        %v276 = vsel %vm244, %v267, 0.0
        %v277 = vrot.slane %v276, 4
        %v278 = vadd.f32 %v276, %v277
        %v279 = vrot.slane %v278, 2
        %v280 = vadd.f32 %v278, %v279
        %v281 = vrot.slane %v280, 1
        %v282 = vadd.f32 %v280, %v281
        %v283 = vlaneseq
        %v284 = vshrl.u32 %v283, 7
        %v285 = vlaneseq
        %v286 = vshrl.u32 %v285, 7
        %v287 = vsub.s32 0, %v286
        %v288 = vrot.slane %v239, %v287
        %v289 = vlaneseq
        %v290 = vshrl.u32 %v289, 7
        %v291 = vsub.s32 1, %v290
        %v292 = vrot.slane %v239, %v291
        %vm293 = vcmp.eq.s32.totalorder %v284, %v288
        %vm294 = vcmp.eq.s32.totalorder %v284, %v292
        %v295 = vsel %vm293, 1, 0
        %v296 = vsel %vm294, 1, 0
        %v297 = vcvt.s32.f32 %v295
        %v298 = vcvt.s32.f32 %v296
        %v301 = vcombine.low %v297, %v298
        %v303 = vmul.f32 %v265, %v301
        %v305 = vcombine.high %v303, %v303
        %v307 = vsel %vm244, %v303, 0.0
        %v308 = vrot.slane %v307, 4
        %v309 = vadd.f32 %v307, %v308
        %v310 = vrot.slane %v309, 2
        %v311 = vadd.f32 %v309, %v310
        %v312 = vrot.slane %v311, 1
        %v313 = vadd.f32 %v311, %v312
        %v314 = vsel %vm244, %v305, 0.0
        %v315 = vrot.slane %v314, 4
        %v316 = vadd.f32 %v314, %v315
        %v317 = vrot.slane %v316, 2
        %v318 = vadd.f32 %v316, %v317
        %v319 = vrot.slane %v318, 1
        %v320 = vadd.f32 %v318, %v319
        %v321 = vrcp.pop %v275
        %v322 = vmul.f32 %v313, %v321
        %v323 = vrcp.pop %v282
        %v324 = vmul.f32 %v320, %v323
        %v325 = vadd.f32 %v322, 0.0001
        %v326 = vadd.f32 %v324, 0.0001
        %328 = vset.pattern.permute.xlu0 0
        %329 = vperm.xlu0 %328, %v240
        %v330 = vpop.permute.xlu0 %329
        %v332 = vmul.f32 %v330, %v297
        %v333 = vmul.f32 %v330, %v298
        %v334 = vsel %vm244, %v332, 0.0
        %v335 = vrot.slane %v334, 4
        %v336 = vadd.f32 %v334, %v335
        %v337 = vrot.slane %v336, 2
        %v338 = vadd.f32 %v336, %v337
        %v339 = vrot.slane %v338, 1
        %v340 = vadd.f32 %v338, %v339
        %v341 = vsel %vm244, %v333, 0.0
        %v342 = vrot.slane %v341, 4
        %v343 = vadd.f32 %v341, %v342
        %v344 = vrot.slane %v343, 2
        %v345 = vadd.f32 %v343, %v344
        %v346 = vrot.slane %v345, 1
        %v347 = vadd.f32 %v345, %v346
        %v348 = vsub.f32 1.0, %v325
        %v349 = vsub.f32 1.0, %v326
        %v350 = vmul.f32 %v348, %v348
        %v351 = vmul.f32 %v349, %v349
        %v352 = vsub.f32 0.0, %v340
        %v353 = vsub.f32 0.0, %v347
        %v354 = vmul.f32 %v352, %v350
        %v355 = vmul.f32 %v353, %v351
        %v356 = vlog2.pop %v325
        %v357 = vmul.f32 %v356, 0.6931472
        %v358 = vlog2.pop %v326
        %v359 = vmul.f32 %v358, 0.6931472
        %v360 = vmul.f32 %v354, %v357
        %v361 = vmul.f32 %v355, %v359
        %v362 = vadd.f32 %v360, %v361
        %363 = vadd.xlane.f32.xlu0 %v362
        %v364 = vpop.xlane.xlu0 %363
        %365 = vst [vmem:[%s227] sm:$0x1] %v364
        %s366 = sand.u32 %s119, 1
        %s367 = scalar_lea.sflag [#allocation4], %s366
        %s368 = sand.u32 %s119, 1
        %s369 = scalar_lea.vmem [#allocation5], %s368
        // Predicated region
        $region37: #{tpu_custom_call.1} parent=31 // pred_check
          %p370 = pneg %p129
        $region38: #{tpu_custom_call.1} parent=31 // pred_check_branch
          %372 = sbr.rel (%p370) target = $region40
        $region39: #{tpu_custom_call.1} parent=31 // pred_region
          %s374 = ssub.s32 16, 16
          %375 = vsyncadd %s367, %s374
          %s376 = sadd.s32 %s25, %s24
          %s377 = smul.addr %s376, 16
          %s378 = scalar_lea.hbm %s3, %s377
          %s380 = sshll.u32 %s369, 4
          %s381 = int_to_ptr.vmem [resolvable:$true] %s380
          %383 = dma.vmem_to_hbm [thread:$0]  %s381, 16, %s378, %s367
        $region40: #{tpu_custom_call.1} parent=31 // pred_fallthru
          _
      $region32: #{tpu_custom_call.1} parent=5 // pred_fallthru
        _
      %p384 = scmp.le.s32.totalorder 2, %s15
      // Predicated region
      $region41: #{tpu_custom_call.1} parent=5 // pred_check
        %p385 = pneg %p384
      $region42: #{tpu_custom_call.1} parent=5 // pred_check_branch
        %387 = sbr.rel (%p385) target = $region44
      $region43: #{tpu_custom_call.1} parent=5 // pred_region
        %s388 = ssub.s32 %s15, 2
        // Predicated region
        $region45: #{tpu_custom_call.1} parent=43 // pred_check
          %p389 = pneg %p135
        $region46: #{tpu_custom_call.1} parent=43 // pred_check_branch
          %391 = sbr.rel (%p389) target = $region48
        $region47: #{tpu_custom_call.1} parent=43 // pred_region
          %s392 = sand.u32 %s120, 1
          %s393 = scalar_lea.sflag [#allocation4], %s392
          %s394 = sand.u32 %s120, 1
          %s395 = scalar_lea.vmem [#allocation5], %s394
          %396 = dma.done %s393, 16
        $region48: #{tpu_custom_call.1} parent=43 // pred_fallthru
          _
      $region44: #{tpu_custom_call.1} parent=5 // pred_fallthru
        _
    $region6: #{tpu_custom_call.1} parent=1 // loop_footer
      %s19 = sadd.s32 1, %s15
    $region7: #{tpu_custom_call.1} parent=1 // loop_footer_branch
      %14 = sbr.rel target = $region3
    $region8: #{tpu_custom_call.1} parent=1 // loop_exit
      _
    %397 = vsyncpa [#allocation3], 1
    %s398 = scalar_lea.sflag [#allocation3], 1
    %399 = vsyncpa %s398, 1
    %400 = vsyncpa [#allocation4], 1
    %s401 = scalar_lea.sflag [#allocation4], 1
    %402 = vsyncpa %s401, 1

</llo_original>
